<compile_context>
chip_gen: v7x
topology: tpu7x:2x2x1
jax: 0.10.0
libtpu: 0.0.40
codegen_flags: <defaults>
</compile_context>

<pallas_src>
import functools

import jax
import jax.numpy as jnp
from jax.experimental import pallas as pl
from jax.experimental.pallas import tpu as pltpu


def conv3x3_prelu_kernel(x_ref, w_ref, b_ref, a_ref, o_ref, *, W, compute_dtype):
    """One (batch, row-tile) grid step of Conv2d(3x3, pad=1) + bias + PReLU.

    x_ref: (1, Cin, n_ht, TILE)  full per-batch image, rows grouped into row tiles,
                                 TILE = TH*W flattened on the lane axis, input dtype.
    w_ref: (Cout, 9*Cin)         weights, K ordered (kh, kw, cin), compute dtype.
    b_ref: (Cout, 1)             f32 conv bias.
    a_ref: (1,)   (SMEM)         f32 PReLU alpha (single shared parameter).
    o_ref: (1, Cout, TILE)       one row tile of the NCHW-flat output.
    """
    n_ht = x_ref.shape[2]
    TILE = x_ref.shape[3]
    HW = n_ht * TILE
    t = pl.program_id(1)

    def load_row_tile(idx):
        # (Cin, TILE); dynamic index only on the sublane (row-tile) axis.
        return x_ref[0, :, pl.ds(idx, 1), :][:, 0, :]

    mid = load_row_tile(t)
    prev = load_row_tile(jnp.maximum(t - 1, 0))           # only its last W lanes used
    nxt = load_row_tile(jnp.minimum(t + 1, n_ht - 1))     # only its first W lanes used

    # Row slabs: slab_dh[j] == x_flat[t*TILE + j + dh*W]; wrapped entries masked below.
    if TILE > W:
        up = jnp.concatenate([prev[:, TILE - W:], mid[:, :TILE - W]], axis=1)
        down = jnp.concatenate([mid[:, W:], nxt[:, :W]], axis=1)
    else:  # TH == 1: the halo row is the whole neighbouring row tile
        up, down = prev, nxt

    mid = mid.astype(compute_dtype)
    up = up.astype(compute_dtype)
    down = down.astype(compute_dtype)

    # Validity masks over flat tile positions (spatial index lives on the lane axis).
    pos = jax.lax.broadcasted_iota(jnp.int32, (1, TILE), 1) + t * TILE
    if W & (W - 1) == 0:
        col = pos & (W - 1)
    else:
        col = pos % W
    zero = jnp.zeros((), compute_dtype)
    up = jnp.where(pos >= W, up, zero)           # row h-1 exists
    down = jnp.where(pos < HW - W, down, zero)   # row h+1 exists
    left_ok = col > 0                            # col w-1 exists
    right_ok = col < (W - 1)                     # col w+1 exists

    def shift_left(v):   # out[j] = v[j-1]   (kw = 0, dw = -1)
        return jnp.concatenate([v[:, -1:], v[:, :-1]], axis=1)

    def shift_right(v):  # out[j] = v[j+1]   (kw = 2, dw = +1)
        return jnp.concatenate([v[:, 1:], v[:, :1]], axis=1)

    # im2col patches, K ordered (kh, kw, cin); spatial stays lane-dense throughout.
    taps = []
    for row in (up, mid, down):                               # kh = 0, 1, 2
        taps.append(jnp.where(left_ok, shift_left(row), zero))   # kw = 0
        taps.append(row)                                          # kw = 1
        taps.append(jnp.where(right_ok, shift_right(row), zero))  # kw = 2
    patches = jnp.concatenate(taps, axis=0)                   # (9*Cin, TILE)

    acc = jax.lax.dot_general(                                # (Cout, TILE) f32
        w_ref[...], patches,
        dimension_numbers=(((1,), (0,)), ((), ())),
        preferred_element_type=jnp.float32)
    acc = acc + b_ref[...]                                    # bias, broadcast over lanes
    alpha = a_ref[0]                                          # scalar from SMEM
    out = jnp.where(acc >= 0.0, acc, alpha * acc)             # PReLU (num_parameters=1)
    o_ref[0] = out.astype(o_ref.dtype)


def _pick_row_tile(H, W, cap):
    """Largest TH dividing H with TH*W <= cap and TH*W % 128 == 0 (lane-dense tiles).

    Falls back to the largest divisor under the cap (masked stores, still correct),
    then to the full height.
    """
    best = None
    for t in range(1, H + 1):
        if H % t == 0 and t * W <= cap and (t * W) % 128 == 0:
            best = t
    if best is not None:
        return best
    for t in range(H, 0, -1):
        if H % t == 0 and t * W <= cap:
            return t
    return H


def conv_block_forward(x_nchw, weight, bias, alpha, *,
                       compute_dtype=jnp.float32, tile_cap=16384):
    """ConvBlock forward: PReLU(Conv2d(x, 3x3, stride=1, pad=1) + bias).

    x_nchw: (N, Cin, H, W); weight: (Cout, Cin, 3, 3); bias: (Cout,); alpha: scalar.
    Returns (N, Cout, H, W) in x's dtype.  MXU operands use `compute_dtype`
    (bf16 optional); accumulation, bias and PReLU stay in f32.
    """
    N, Cin, H, W = x_nchw.shape
    Cout = weight.shape[0]

    TH = _pick_row_tile(H, W, tile_cap)
    n_ht = H // TH
    TILE = TH * W
    HW = H * W

    # Layout glue (all free / tiny): contiguous reshape, weight repack, f32 bias.
    x_tiles = x_nchw.reshape(N, Cin, n_ht, TILE)
    # (Cout, Cin, 3, 3) -> (Cout, 3, 3, Cin) -> (Cout, 9*Cin); K order = (kh, kw, cin).
    w2 = jnp.transpose(weight, (0, 2, 3, 1)).reshape(Cout, 9 * Cin).astype(compute_dtype)
    b2 = bias.astype(jnp.float32).reshape(Cout, 1)
    a1 = jnp.asarray(alpha, jnp.float32).reshape(1)

    # VMEM budget: double-buffered input/output blocks + patches/accumulator,
    # with sublane padding of the row-tile / channel axes accounted for.
    x_bytes = jnp.dtype(x_nchw.dtype).itemsize
    c_bytes = jnp.dtype(compute_dtype).itemsize
    in_blk = Cin * max(n_ht, 8) * TILE * x_bytes
    out_blk = max(Cout, 8) * TILE * x_bytes
    scratch = (9 * Cin + 8) * TILE * c_bytes + 2 * max(Cout, 8) * TILE * 4
    needed = 2 * in_blk + 2 * out_blk + scratch + (2 << 20)
    vmem_limit = int(min(max(needed, 32 << 20), 64 << 20))  # 64 MiB <= physical on all gens

    cost = pl.CostEstimate(
        flops=2 * N * Cout * 9 * Cin * H * W,
        transcendentals=0,
        bytes_accessed=int(N * (Cin + Cout) * HW * x_bytes + w2.size * c_bytes),
    )

    out_flat = pl.pallas_call(
        functools.partial(conv3x3_prelu_kernel, W=W, compute_dtype=compute_dtype),
        out_shape=jax.ShapeDtypeStruct((N, Cout, HW), x_nchw.dtype),
        grid_spec=pltpu.PrefetchScalarGridSpec(
            num_scalar_prefetch=0,
            grid=(N, n_ht),
            in_specs=[
                # Full per-batch image; block index constant across the row-tile axis
                # so it is DMA'd once per batch element and never duplicated per core.
                pl.BlockSpec((1, Cin, n_ht, TILE), lambda n, t: (n, 0, 0, 0)),
                pl.BlockSpec((Cout, 9 * Cin), lambda n, t: (0, 0)),
                pl.BlockSpec((Cout, 1), lambda n, t: (0, 0)),
                pl.BlockSpec(memory_space=pltpu.MemorySpace.SMEM),   # alpha scalar
            ],
            out_specs=pl.BlockSpec((1, Cout, TILE), lambda n, t: (n, 0, t)),
        ),
        compiler_params=pltpu.CompilerParams(
            dimension_semantics=("parallel", "arbitrary"),
            vmem_limit_bytes=vmem_limit),
        cost_estimate=cost,
    )(x_tiles, w2, b2, a1)

    # Free reshape: NCHW-flat -> NCHW (kernel already wrote the final layout).
    return out_flat.reshape(N, Cout, H, W)


def _reference(x_nchw, weight, bias, alpha):
    out = jax.lax.conv_general_dilated(
        x_nchw, weight, window_strides=(1, 1), padding=((1, 1), (1, 1)),
        dimension_numbers=("NCHW", "OIHW", "NCHW"))
    out = out + bias[None, :, None, None]
    return jnp.where(out >= 0, out, alpha * out)


if __name__ == "__main__":
    key = jax.random.PRNGKey(0)
    k_x, k_w, k_b = jax.random.split(key, 3)

    N, Cin, Cout, H, W = 2, 4, 8, 16, 16
    x = jax.random.normal(k_x, (N, Cin, H, W), dtype=jnp.float32)
    weight = jax.random.normal(k_w, (Cout, Cin, 3, 3), dtype=jnp.float32) * 0.1
    bias = jax.random.normal(k_b, (Cout,), dtype=jnp.float32) * 0.1
    alpha = jnp.float32(0.25)  # PyTorch PReLU default init (num_parameters=1)

    ref = _reference(x, weight, bias, alpha)

    # Exactness check: f32 MXU path matches the XLA conv reference tightly.
    fwd_f32 = jax.jit(functools.partial(conv_block_forward, compute_dtype=jnp.float32))
    out_f32 = jax.block_until_ready(fwd_f32(x, weight, bias, alpha))
    assert out_f32.shape == (N, Cout, H, W)
    assert jnp.allclose(out_f32, ref, atol=1e-4, rtol=1e-4)

    # Fast path: bf16 MXU operands (cast in-kernel), f32 accumulate/bias/PReLU.
    fwd_bf16 = jax.jit(functools.partial(conv_block_forward, compute_dtype=jnp.bfloat16))
    out_bf16 = jax.block_until_ready(fwd_bf16(x, weight, bias, alpha))
    assert out_bf16.shape == (N, Cout, H, W)
    assert jnp.allclose(out_bf16, ref, atol=5e-2, rtol=5e-2)

    print("KERNEL_OK")
</pallas_src>

<mosaic_0001>
module attributes {stable_mosaic.version = 11 : i64} {
  func.func @conv3x3_prelu_kernel(%arg0: i32, %arg1: i32, %arg2: memref<1x4x1x256xf32, #tpu.memory_space<vmem>>, %arg3: memref<8x36xf32, #tpu.memory_space<vmem>>, %arg4: memref<8x1xf32, #tpu.memory_space<vmem>>, %arg5: memref<1xf32, #tpu.memory_space<smem>>, %arg6: memref<1x8x256xf32, #tpu.memory_space<vmem>>) attributes {dimension_semantics = [#tpu.dimension_semantics<parallel>, #tpu.dimension_semantics<arbitrary>], iteration_bounds = array<i64: 2, 1>, scalar_prefetch = 0 : i64, scratch_operands = 0 : i64, tpu.core_type = #tpu.core_type<tc>, window_params = [{transform_indices = @transform_0, window_bounds = array<i64: 1, 4, 1, 256>}, {pipeline_mode = #tpu.pipeline_mode<synchronous>, transform_indices = @transform_1, window_bounds = array<i64: 8, 36>}, {pipeline_mode = #tpu.pipeline_mode<synchronous>, transform_indices = @transform_2, window_bounds = array<i64: 8, 1>}, {transform_indices = @transform_3, window_bounds = array<i64: 1>}, {transform_indices = @transform_4, window_bounds = array<i64: 1, 8, 256>}]} {
    %c0 = arith.constant 0 : index
    %c0_0 = arith.constant 0 : index
    %0 = arith.index_cast %arg1 : i32 to index
    %c0_1 = arith.constant 0 : index
    %1 = vector.load %arg2[%c0, %c0_0, %0, %c0_1] : memref<1x4x1x256xf32, #tpu.memory_space<vmem>>, vector<1x4x1x256xf32>
    %2 = vector.shape_cast %1 : vector<1x4x1x256xf32> to vector<4x1x256xf32>
    %3 = vector.shape_cast %2 : vector<4x1x256xf32> to vector<4x256xf32>
    %c1_i32 = arith.constant 1 : i32
    %4 = arith.subi %arg1, %c1_i32 : i32
    %c0_i32 = arith.constant 0 : i32
    %5 = arith.maxsi %4, %c0_i32 : i32
    %c0_2 = arith.constant 0 : index
    %c0_3 = arith.constant 0 : index
    %6 = arith.index_cast %5 : i32 to index
    %c0_4 = arith.constant 0 : index
    %7 = vector.load %arg2[%c0_2, %c0_3, %6, %c0_4] : memref<1x4x1x256xf32, #tpu.memory_space<vmem>>, vector<1x4x1x256xf32>
    %8 = vector.shape_cast %7 : vector<1x4x1x256xf32> to vector<4x1x256xf32>
    %9 = vector.shape_cast %8 : vector<4x1x256xf32> to vector<4x256xf32>
    %c1_i32_5 = arith.constant 1 : i32
    %10 = arith.addi %arg1, %c1_i32_5 : i32
    %c0_i32_6 = arith.constant 0 : i32
    %11 = arith.minsi %10, %c0_i32_6 : i32
    %c0_7 = arith.constant 0 : index
    %c0_8 = arith.constant 0 : index
    %12 = arith.index_cast %11 : i32 to index
    %c0_9 = arith.constant 0 : index
    %13 = vector.load %arg2[%c0_7, %c0_8, %12, %c0_9] : memref<1x4x1x256xf32, #tpu.memory_space<vmem>>, vector<1x4x1x256xf32>
    %14 = vector.shape_cast %13 : vector<1x4x1x256xf32> to vector<4x1x256xf32>
    %15 = vector.shape_cast %14 : vector<4x1x256xf32> to vector<4x256xf32>
    %16 = vector.extract_strided_slice %9 {offsets = [0, 240], sizes = [4, 16], strides = [1, 1]} : vector<4x256xf32> to vector<4x16xf32>
    %17 = vector.extract_strided_slice %3 {offsets = [0, 0], sizes = [4, 240], strides = [1, 1]} : vector<4x256xf32> to vector<4x240xf32>
    %18 = tpu.concatenate %16, %17 in 1 : vector<4x16xf32>, vector<4x240xf32> -> vector<4x256xf32>
    %19 = vector.extract_strided_slice %3 {offsets = [0, 16], sizes = [4, 240], strides = [1, 1]} : vector<4x256xf32> to vector<4x240xf32>
    %20 = vector.extract_strided_slice %15 {offsets = [0, 0], sizes = [4, 16], strides = [1, 1]} : vector<4x256xf32> to vector<4x16xf32>
    %21 = tpu.concatenate %19, %20 in 1 : vector<4x240xf32>, vector<4x16xf32> -> vector<4x256xf32>
    %22 = tpu.iota {dimensions = array<i32: 1>} : vector<1x256xi32>
    %c256_i32 = arith.constant 256 : i32
    %23 = arith.muli %arg1, %c256_i32 : i32
    %24 = vector.broadcast %23 : i32 to vector<1x256xi32>
    %25 = arith.addi %22, %24 : vector<1x256xi32>
    %c15_i32 = arith.constant 15 : i32
    %26 = vector.broadcast %c15_i32 : i32 to vector<1x256xi32>
    %27 = arith.andi %25, %26 : vector<1x256xi32>
    %c16_i32 = arith.constant 16 : i32
    %28 = vector.broadcast %c16_i32 : i32 to vector<1x256xi32>
    %29 = arith.cmpi sge, %25, %28 : vector<1x256xi32>
    %cst = arith.constant 0.000000e+00 : f32
    %30 = vector.shape_cast %29 : vector<1x256xi1> to vector<1x256xi1>
    %31 = vector.broadcast %30 : vector<1x256xi1> to vector<4x256xi1>
    %32 = vector.broadcast %cst : f32 to vector<4x256xf32>
    %33 = arith.select %31, %18, %32 : vector<4x256xi1>, vector<4x256xf32>
    %c240_i32 = arith.constant 240 : i32
    %34 = vector.broadcast %c240_i32 : i32 to vector<1x256xi32>
    %35 = arith.cmpi slt, %25, %34 : vector<1x256xi32>
    %cst_10 = arith.constant 0.000000e+00 : f32
    %36 = vector.shape_cast %35 : vector<1x256xi1> to vector<1x256xi1>
    %37 = vector.broadcast %36 : vector<1x256xi1> to vector<4x256xi1>
    %38 = vector.broadcast %cst_10 : f32 to vector<4x256xf32>
    %39 = arith.select %37, %21, %38 : vector<4x256xi1>, vector<4x256xf32>
    %c0_i32_11 = arith.constant 0 : i32
    %40 = vector.broadcast %c0_i32_11 : i32 to vector<1x256xi32>
    %41 = arith.cmpi sgt, %27, %40 : vector<1x256xi32>
    %c15_i32_12 = arith.constant 15 : i32
    %42 = vector.broadcast %c15_i32_12 : i32 to vector<1x256xi32>
    %43 = arith.cmpi slt, %27, %42 : vector<1x256xi32>
    %44 = vector.extract_strided_slice %33 {offsets = [0, 255], sizes = [4, 1], strides = [1, 1]} : vector<4x256xf32> to vector<4x1xf32>
    %45 = vector.extract_strided_slice %33 {offsets = [0, 0], sizes = [4, 255], strides = [1, 1]} : vector<4x256xf32> to vector<4x255xf32>
    %46 = tpu.concatenate %44, %45 in 1 : vector<4x1xf32>, vector<4x255xf32> -> vector<4x256xf32>
    %cst_13 = arith.constant 0.000000e+00 : f32
    %47 = vector.shape_cast %41 : vector<1x256xi1> to vector<1x256xi1>
    %48 = vector.broadcast %47 : vector<1x256xi1> to vector<4x256xi1>
    %49 = vector.broadcast %cst_13 : f32 to vector<4x256xf32>
    %50 = arith.select %48, %46, %49 : vector<4x256xi1>, vector<4x256xf32>
    %51 = vector.extract_strided_slice %33 {offsets = [0, 1], sizes = [4, 255], strides = [1, 1]} : vector<4x256xf32> to vector<4x255xf32>
    %52 = vector.extract_strided_slice %33 {offsets = [0, 0], sizes = [4, 1], strides = [1, 1]} : vector<4x256xf32> to vector<4x1xf32>
    %53 = tpu.concatenate %51, %52 in 1 : vector<4x255xf32>, vector<4x1xf32> -> vector<4x256xf32>
    %cst_14 = arith.constant 0.000000e+00 : f32
    %54 = vector.shape_cast %43 : vector<1x256xi1> to vector<1x256xi1>
    %55 = vector.broadcast %54 : vector<1x256xi1> to vector<4x256xi1>
    %56 = vector.broadcast %cst_14 : f32 to vector<4x256xf32>
    %57 = arith.select %55, %53, %56 : vector<4x256xi1>, vector<4x256xf32>
    %58 = vector.extract_strided_slice %3 {offsets = [0, 255], sizes = [4, 1], strides = [1, 1]} : vector<4x256xf32> to vector<4x1xf32>
    %59 = vector.extract_strided_slice %3 {offsets = [0, 0], sizes = [4, 255], strides = [1, 1]} : vector<4x256xf32> to vector<4x255xf32>
    %60 = tpu.concatenate %58, %59 in 1 : vector<4x1xf32>, vector<4x255xf32> -> vector<4x256xf32>
    %cst_15 = arith.constant 0.000000e+00 : f32
    %61 = vector.shape_cast %41 : vector<1x256xi1> to vector<1x256xi1>
    %62 = vector.broadcast %61 : vector<1x256xi1> to vector<4x256xi1>
    %63 = vector.broadcast %cst_15 : f32 to vector<4x256xf32>
    %64 = arith.select %62, %60, %63 : vector<4x256xi1>, vector<4x256xf32>
    %65 = vector.extract_strided_slice %3 {offsets = [0, 1], sizes = [4, 255], strides = [1, 1]} : vector<4x256xf32> to vector<4x255xf32>
    %66 = vector.extract_strided_slice %3 {offsets = [0, 0], sizes = [4, 1], strides = [1, 1]} : vector<4x256xf32> to vector<4x1xf32>
    %67 = tpu.concatenate %65, %66 in 1 : vector<4x255xf32>, vector<4x1xf32> -> vector<4x256xf32>
    %cst_16 = arith.constant 0.000000e+00 : f32
    %68 = vector.shape_cast %43 : vector<1x256xi1> to vector<1x256xi1>
    %69 = vector.broadcast %68 : vector<1x256xi1> to vector<4x256xi1>
    %70 = vector.broadcast %cst_16 : f32 to vector<4x256xf32>
    %71 = arith.select %69, %67, %70 : vector<4x256xi1>, vector<4x256xf32>
    %72 = vector.extract_strided_slice %39 {offsets = [0, 255], sizes = [4, 1], strides = [1, 1]} : vector<4x256xf32> to vector<4x1xf32>
    %73 = vector.extract_strided_slice %39 {offsets = [0, 0], sizes = [4, 255], strides = [1, 1]} : vector<4x256xf32> to vector<4x255xf32>
    %74 = tpu.concatenate %72, %73 in 1 : vector<4x1xf32>, vector<4x255xf32> -> vector<4x256xf32>
    %cst_17 = arith.constant 0.000000e+00 : f32
    %75 = vector.shape_cast %41 : vector<1x256xi1> to vector<1x256xi1>
    %76 = vector.broadcast %75 : vector<1x256xi1> to vector<4x256xi1>
    %77 = vector.broadcast %cst_17 : f32 to vector<4x256xf32>
    %78 = arith.select %76, %74, %77 : vector<4x256xi1>, vector<4x256xf32>
    %79 = vector.extract_strided_slice %39 {offsets = [0, 1], sizes = [4, 255], strides = [1, 1]} : vector<4x256xf32> to vector<4x255xf32>
    %80 = vector.extract_strided_slice %39 {offsets = [0, 0], sizes = [4, 1], strides = [1, 1]} : vector<4x256xf32> to vector<4x1xf32>
    %81 = tpu.concatenate %79, %80 in 1 : vector<4x255xf32>, vector<4x1xf32> -> vector<4x256xf32>
    %cst_18 = arith.constant 0.000000e+00 : f32
    %82 = vector.shape_cast %43 : vector<1x256xi1> to vector<1x256xi1>
    %83 = vector.broadcast %82 : vector<1x256xi1> to vector<4x256xi1>
    %84 = vector.broadcast %cst_18 : f32 to vector<4x256xf32>
    %85 = arith.select %83, %81, %84 : vector<4x256xi1>, vector<4x256xf32>
    %86 = tpu.concatenate %50, %33, %57, %64, %3, %71, %78, %39, %85 in 0 : vector<4x256xf32>, vector<4x256xf32>, vector<4x256xf32>, vector<4x256xf32>, vector<4x256xf32>, vector<4x256xf32>, vector<4x256xf32>, vector<4x256xf32>, vector<4x256xf32> -> vector<36x256xf32>
    %c0_19 = arith.constant 0 : index
    %c0_20 = arith.constant 0 : index
    %87 = vector.load %arg3[%c0_19, %c0_20] : memref<8x36xf32, #tpu.memory_space<vmem>>, vector<8x36xf32>
    %cst_21 = arith.constant dense<0.000000e+00> : vector<8x256xf32>
    %88 = tpu.matmul %87, %86, %cst_21 {dimension_numbers = #tpu.dot_dimension_numbers<[1], [0], [0], [1], [0, 0, 1, 1], [], []>} : vector<8x36xf32>, vector<36x256xf32>, vector<8x256xf32> -> vector<8x256xf32>
    %c0_22 = arith.constant 0 : index
    %c0_23 = arith.constant 0 : index
    %89 = vector.load %arg4[%c0_22, %c0_23] : memref<8x1xf32, #tpu.memory_space<vmem>>, vector<8x1xf32>
    %90 = vector.broadcast %89 : vector<8x1xf32> to vector<8x256xf32>
    %91 = arith.addf %88, %90 : vector<8x256xf32>
    %c0_24 = arith.constant 0 : index
    %92 = memref.load %arg5[%c0_24] : memref<1xf32, #tpu.memory_space<smem>>
    %cst_25 = arith.constant 0.000000e+00 : f32
    %93 = vector.broadcast %cst_25 : f32 to vector<8x256xf32>
    %94 = arith.cmpf oge, %91, %93 : vector<8x256xf32>
    %95 = vector.broadcast %92 : f32 to vector<8x256xf32>
    %96 = arith.mulf %95, %91 : vector<8x256xf32>
    %97 = arith.select %94, %91, %96 : vector<8x256xi1>, vector<8x256xf32>
    %c0_26 = arith.constant 0 : index
    %c0_27 = arith.constant 0 : index
    %c0_28 = arith.constant 0 : index
    %98 = vector.load %arg6[%c0_26, %c0_27, %c0_28] : memref<1x8x256xf32, #tpu.memory_space<vmem>>, vector<1x8x256xf32>
    %99 = vector.shape_cast %98 : vector<1x8x256xf32> to vector<8x256xf32>
    %100 = vector.shape_cast %97 : vector<8x256xf32> to vector<1x8x256xf32>
    tpu.vector_store %arg6[%c0_26, %c0_27, %c0_28], %100 {strides = array<i32>} : memref<1x8x256xf32, #tpu.memory_space<vmem>>, vector<1x8x256xf32>,
    return
  }
  func.func @transform_0(%arg0: i32, %arg1: i32) -> (i32, i32, i32, i32) {
    %c0_i32 = arith.constant 0 : i32
    %c0_i32_0 = arith.constant 0 : i32
    %c0_i32_1 = arith.constant 0 : i32
    %c0_i32_2 = arith.constant 0 : i32
    return %arg0, %c0_i32, %c0_i32_0, %c0_i32_1 : i32, i32, i32, i32
  }
  func.func @transform_1(%arg0: i32, %arg1: i32) -> (i32, i32) {
    %c0_i32 = arith.constant 0 : i32
    %c0_i32_0 = arith.constant 0 : i32
    %c0_i32_1 = arith.constant 0 : i32
    return %c0_i32, %c0_i32_0 : i32, i32
  }
  func.func @transform_2(%arg0: i32, %arg1: i32) -> (i32, i32) {
    %c0_i32 = arith.constant 0 : i32
    %c0_i32_0 = arith.constant 0 : i32
    %c0_i32_1 = arith.constant 0 : i32
    return %c0_i32, %c0_i32_0 : i32, i32
  }
  func.func @transform_3(%arg0: i32, %arg1: i32) -> i32 {
    %c0_i32 = arith.constant 0 : i32
    %c0_i32_0 = arith.constant 0 : i32
    return %c0_i32 : i32
  }
  func.func @transform_4(%arg0: i32, %arg1: i32) -> (i32, i32, i32) {
    %c0_i32 = arith.constant 0 : i32
    %c0_i32_0 = arith.constant 0 : i32
    return %arg0, %c0_i32, %arg1 : i32, i32, i32
  }
}

</mosaic_0001>

<llo_original>
// kernel: conv_block_forward.1
$region0: #{conv_block_forward.1}
  #allocation0 [shape = 'u32[]', space=smem, size = 0x4, offset = 0x4, fixed_abs, tag = 'smem constant byte address 0x4 - core index']
  #allocation1 [shape = 'u32[144,128]{1,0:T(1,128)}', space=vmem, size = 0x12000, scoped, tag = 'internal scratch']
  #allocation2 [shape = 'f32[1]{0:T(128)S(6)}', space=smem, size = 0x200, scoped, tag = 'scoped memory for conv_block_forward.1']
  %s0 = inlined_call_operand.vmem [shape: f32[2,4,1,256], index: 0, kind: input, shape index: {}]
  %s1 = inlined_call_operand.vmem [shape: f32[8,36], index: 1, kind: input, shape index: {}]
  %s2 = inlined_call_operand.vmem [shape: f32[8,1], index: 2, kind: input, shape index: {}]
  %s3 = inlined_call_operand.<no memory space> [shape: f32[1], index: 3, kind: input, shape index: {}]
  %s4 = inlined_call_operand.vmem [shape: f32[2,8,256], index: 4, kind: output, shape index: {}]
  %s5 = sld [smem:[#allocation0]]
  $region49: #{conv_block_forward.1} parent=0
    _
  %s7 = ssub.s32 1, %s5
  %s8 = scalar_select 0, %s7, %s5
  %9 = sst [smem:[#allocation2]] %s3
  loop: start=0, step=1, limit=4
  $region2: #{conv_block_forward.1} parent=0 // loop_pre_header
    _
  $region3: #{conv_block_forward.1} parent=0 // loop_header
    %s11 = sphi 0, %s15
    %p12 = scmp.ge.s32.totalorder %s11, 4
    %s18 = sphi 0, %s30
    %s19 = sphi 0, %s26
    %s20 = sphi 0, %s18
    %s21 = sphi 0, %s19
    %s22 = sphi 0, %s20
    %s23 = sphi 0, %s21
    %s33 = sphi 0, %s35
    %s36 = sphi 0, %s33
    %s37 = sphi 0, %s36
    %s53 = sphi 0, %s37
    %s57 = sphi 0, %s57
    %s59 = sphi 0, %s57
    %s60 = sphi 0, %s59
    %s74 = sphi 0, %s60
    %s78 = sphi 0, %s78
    %s80 = sphi 0, %s78
    %s81 = sphi 0, %s80
    %s95 = sphi 0, %s81
    %s99 = sphi 0, %s99
    %s101 = sphi 0, %s99
    %s102 = sphi 0, %s101
    %s116 = sphi 0, %s102
    %s124 = sphi 0, %s126
    %s127 = sphi 0, %s124
    %s128 = sphi 0, %s127
    %s144 = sphi 0, %s128
  $region4: #{conv_block_forward.1} parent=0 // loop_header_branch
    %14 = sbr.rel (%p12) target = $region8
  $region5: #{conv_block_forward.1} parent=0 // loop_body
    %s16 = ssub.s32 %s11, 1
    %s17 = ssub.s32 %s11, 2
    %s24 = sadd.s32 1, %s19
    %p25 = scmp.ge.s32.totalorder %s24, 1
    %s26 = scalar_select %p25, 0, %s24
    %s27 = sadd.s32 1, %s18
    %s28 = scalar_select %p25, %s27, %s18
    %p29 = scmp.ge.s32.totalorder %s28, 2
    %s30 = scalar_select %p29, 0, %s28
    %s31 = ssub.s32 %s18, %s30
    %p32 = scmp.eq.s32.totalorder %s31, 0
    %s34 = sadd.s32 %s33, 1
    %s35 = scalar_select %p32, %s33, %s34
    %p38 = pneg %p32
    %p39 = scmp.eq.s32.totalorder %s11, 1
    %p40 = por %p38, %p39
    %p41 = scmp.ne.s32.totalorder %s33, %s36
    %p42 = scmp.eq.s32.totalorder %s11, 0
    %p43 = por %p41, %p42
    %p44 = scmp.ne.s32.totalorder %s33, %s36
    %p45 = scmp.eq.s32.totalorder %s16, 1
    %p46 = por %p44, %p45
    %p47 = scmp.ne.s32.totalorder %s36, %s37
    %p48 = scmp.eq.s32.totalorder %s16, 0
    %p49 = por %p47, %p48
    %p50 = scmp.ne.s32.totalorder %s36, %s37
    %p51 = scmp.eq.s32.totalorder %s17, 1
    %p52 = por %p50, %p51
    %p54 = scmp.ne.s32.totalorder %s37, %s53
    %p55 = scmp.eq.s32.totalorder %s17, 0
    %p56 = por %p54, %p55
    %s58 = sadd.s32 %s57, 1
    %p61 = scmp.eq.s32.totalorder %s11, 1
    %p62 = scmp.ne.s32.totalorder %s57, %s59
    %p63 = scmp.eq.s32.totalorder %s11, 0
    %p64 = por %p62, %p63
    %p65 = scmp.ne.s32.totalorder %s57, %s59
    %p66 = scmp.eq.s32.totalorder %s16, 1
    %p67 = por %p65, %p66
    %p68 = scmp.ne.s32.totalorder %s59, %s60
    %p69 = scmp.eq.s32.totalorder %s16, 0
    %p70 = por %p68, %p69
    %p71 = scmp.ne.s32.totalorder %s59, %s60
    %p72 = scmp.eq.s32.totalorder %s17, 1
    %p73 = por %p71, %p72
    %p75 = scmp.ne.s32.totalorder %s60, %s74
    %p76 = scmp.eq.s32.totalorder %s17, 0
    %p77 = por %p75, %p76
    %s79 = sadd.s32 %s78, 1
    %p82 = scmp.eq.s32.totalorder %s11, 1
    %p83 = scmp.ne.s32.totalorder %s78, %s80
    %p84 = scmp.eq.s32.totalorder %s11, 0
    %p85 = por %p83, %p84
    %p86 = scmp.ne.s32.totalorder %s78, %s80
    %p87 = scmp.eq.s32.totalorder %s16, 1
    %p88 = por %p86, %p87
    %p89 = scmp.ne.s32.totalorder %s80, %s81
    %p90 = scmp.eq.s32.totalorder %s16, 0
    %p91 = por %p89, %p90
    %p92 = scmp.ne.s32.totalorder %s80, %s81
    %p93 = scmp.eq.s32.totalorder %s17, 1
    %p94 = por %p92, %p93
    %p96 = scmp.ne.s32.totalorder %s81, %s95
    %p97 = scmp.eq.s32.totalorder %s17, 0
    %p98 = por %p96, %p97
    %s100 = sadd.s32 %s99, 1
    %p103 = scmp.eq.s32.totalorder %s11, 1
    %p104 = scmp.ne.s32.totalorder %s99, %s101
    %p105 = scmp.eq.s32.totalorder %s11, 0
    %p106 = por %p104, %p105
    %p107 = scmp.ne.s32.totalorder %s99, %s101
    %p108 = scmp.eq.s32.totalorder %s16, 1
    %p109 = por %p107, %p108
    %p110 = scmp.ne.s32.totalorder %s101, %s102
    %p111 = scmp.eq.s32.totalorder %s16, 0
    %p112 = por %p110, %p111
    %p113 = scmp.ne.s32.totalorder %s101, %s102
    %p114 = scmp.eq.s32.totalorder %s17, 1
    %p115 = por %p113, %p114
    %p117 = scmp.ne.s32.totalorder %s102, %s116
    %p118 = scmp.eq.s32.totalorder %s17, 0
    %p119 = por %p117, %p118
    %s120 = ssub.s32 %s18, %s30
    %s121 = ssub.s32 %s19, %s26
    %s122 = sor.u32 %s120, %s121
    %p123 = scmp.eq.s32.totalorder %s122, 0
    %s125 = sadd.s32 %s124, 1
    %s126 = scalar_select %p123, %s124, %s125
    %p129 = pneg %p123
    %p130 = scmp.eq.s32.totalorder %s11, 1
    %p131 = por %p129, %p130
    %p132 = scmp.ne.s32.totalorder %s124, %s127
    %p133 = scmp.eq.s32.totalorder %s11, 0
    %p134 = por %p132, %p133
    %p135 = scmp.ne.s32.totalorder %s124, %s127
    %p136 = scmp.eq.s32.totalorder %s16, 1
    %p137 = por %p135, %p136
    %p138 = scmp.ne.s32.totalorder %s127, %s128
    %p139 = scmp.eq.s32.totalorder %s16, 0
    %p140 = por %p138, %p139
    %p141 = scmp.ne.s32.totalorder %s127, %s128
    %p142 = scmp.eq.s32.totalorder %s17, 1
    %p143 = por %p141, %p142
    %p145 = scmp.ne.s32.totalorder %s128, %s144
    %p146 = scmp.eq.s32.totalorder %s17, 0
    %p147 = por %p145, %p146
    %p148 = scmp.le.s32.totalorder 1, %s11
    %p149 = scmp.lt.s32.totalorder %s11, 3
    %p150 = pnand %p148, %p149
    %p151 = pneg %p150
    // Predicated region
    $region9: #{conv_block_forward.1} parent=5 // pred_check
      _
    $region10: #{conv_block_forward.1} parent=5 // pred_check_branch
      %153 = sbr.rel (%p150) target = $region12
    $region11: #{conv_block_forward.1} parent=5 // pred_region
      %s154 = ssub.s32 %s11, 1
      // Predicated region
      $region13: #{conv_block_forward.1} parent=11 // pred_check
        %p155 = pneg %p70
      $region14: #{conv_block_forward.1} parent=11 // pred_check_branch
        %157 = sbr.rel (%p155) target = $region16
      $region15: #{conv_block_forward.1} parent=11 // pred_region
        _
      $region16: #{conv_block_forward.1} parent=11 // pred_fallthru
        _
      // Predicated region
      $region17: #{conv_block_forward.1} parent=11 // pred_check
        %p158 = pneg %p91
      $region18: #{conv_block_forward.1} parent=11 // pred_check_branch
        %160 = sbr.rel (%p158) target = $region20
      $region19: #{conv_block_forward.1} parent=11 // pred_region
        _
      $region20: #{conv_block_forward.1} parent=11 // pred_fallthru
        _
      // Predicated region
      $region21: #{conv_block_forward.1} parent=11 // pred_check
        %p161 = pneg %p112
      $region22: #{conv_block_forward.1} parent=11 // pred_check_branch
        %163 = sbr.rel (%p161) target = $region24
      $region23: #{conv_block_forward.1} parent=11 // pred_region
        _
      $region24: #{conv_block_forward.1} parent=11 // pred_fallthru
        _
    $region12: #{conv_block_forward.1} parent=5 // pred_fallthru
      _
    %p164 = scmp.lt.s32.totalorder %s11, 2
    // Predicated region
    $region25: #{conv_block_forward.1} parent=5 // pred_check
      %p165 = pneg %p164
    $region26: #{conv_block_forward.1} parent=5 // pred_check_branch
      %167 = sbr.rel (%p165) target = $region28
    $region27: #{conv_block_forward.1} parent=5 // pred_region
      // Predicated region
      $region29: #{conv_block_forward.1} parent=27 // pred_check
        %p168 = pneg %p43
      $region30: #{conv_block_forward.1} parent=27 // pred_check_branch
        %170 = sbr.rel (%p168) target = $region32
      $region31: #{conv_block_forward.1} parent=27 // pred_region
        %p171 = scmp.lt.s32.totalorder %s18, 1
        %s172 = scalar_select %p171, %s18, 1
        %s173 = smul.addr %s172, 8
        %s174 = scalar_lea.vmem %s0, %s173
      $region32: #{conv_block_forward.1} parent=27 // pred_fallthru
        _
    $region28: #{conv_block_forward.1} parent=5 // pred_fallthru
      _
    %p175 = scmp.le.s32.totalorder 1, %s11
    %p176 = scmp.lt.s32.totalorder %s11, 3
    %p177 = pnand %p175, %p176
    %p178 = pneg %p177
    // Predicated region
    $region33: #{conv_block_forward.1} parent=5 // pred_check
      _
    $region34: #{conv_block_forward.1} parent=5 // pred_check_branch
      %180 = sbr.rel (%p177) target = $region36
    $region35: #{conv_block_forward.1} parent=5 // pred_region
      %s181 = ssub.s32 %s11, 1
      %p182 = scmp.lt.s32.totalorder %s20, 1
      %s183 = scalar_select %p182, %s20, 1
      %s184 = smul.addr %s183, 8
      %s185 = scalar_lea.vmem %s0, %s184
      %p186 = pneg %p49
      %p187 = pneg %p46
      %p188 = pneg %p70
      %p189 = pneg %p67
      %p190 = pneg %p91
      %p191 = pneg %p88
      %p192 = pneg %p112
      %p193 = pneg %p109
      %p194 = pneg %p140
      %p195 = pneg %p137
      %s196 = smul.u32 2, %s21
      %p197 = scmp.lt.s32.totalorder %s20, 1
      %s198 = scalar_select %p197, %s20, 1
      %p199 = scmp.lt.s32.totalorder %s196, 1
      %s200 = scalar_select %p199, %s196, 1
      %s201 = smul.addr %s198, 2
      %s202 = sadd.s32 %s200, %s201
      %s203 = smul.addr %s202, 8
      %s204 = scalar_lea.vmem %s4, %s203
      %p205 = scmp.lt.s32.totalorder %s20, 1
      %s206 = scalar_select %p205, %s20, 1
      %s207 = smul.addr %s206, 8
      %s208 = scalar_lea.vmem %s0, %s207
      %s209 = smul.u32 2, %s21
      %p210 = scmp.lt.s32.totalorder %s20, 1
      %s211 = scalar_select %p210, %s20, 1
      %p212 = scmp.lt.s32.totalorder %s209, 1
      %s213 = scalar_select %p212, %s209, 1
      %s214 = smul.addr %s211, 2
      %s215 = sadd.s32 %s213, %s214
      %s216 = smul.addr %s215, 8
      %s217 = scalar_lea.vmem %s4, %s216
      %s218 = smul.u32 2, %s21
      %s219 = smul.u32 %s21, 2
      %s220 = scalar_lea.vmem %s208, %s219
      %v221 = vld [vmem:[%s220] sm:$0x3]
      %v222 = vld [vmem:[%s220 + $0x2] sm:$0x3]
      %v223 = vld [vmem:[%s220 + $0x4] sm:$0x3]
      %v224 = vld [vmem:[%s220 + $0x6] sm:$0x3]
      %s225 = ssub.s32 %s21, 1
      %p226 = scmp.gt.s32.totalorder %s225, 0
      %s227 = scalar_select %p226, %s225, 0
      %s228 = smul.u32 %s227, 2
      %s229 = scalar_lea.vmem %s208, %s228
      %v230 = vld [vmem:[%s229] sm:$0x3]
      %v231 = vld [vmem:[%s229 + $0x2] sm:$0x3]
      %v232 = vld [vmem:[%s229 + $0x4] sm:$0x3]
      %v233 = vld [vmem:[%s229 + $0x6] sm:$0x3]
      %s234 = sadd.s32 %s21, 1
      %p235 = scmp.lt.s32.totalorder %s234, 0
      %s236 = scalar_select %p235, %s234, 0
      %s237 = smul.u32 %s236, 2
      %s238 = scalar_lea.vmem %s208, %s237
      %v239 = vld [vmem:[%s238] sm:$0x3]
      %v240 = vld [vmem:[%s238 + $0x2] sm:$0x3]
      %v241 = vld [vmem:[%s238 + $0x4] sm:$0x3]
      %v242 = vld [vmem:[%s238 + $0x6] sm:$0x3]
      %v247 = vcombine.low %v230, %v231
      %v248 = vcombine.low %v232, %v233
      %v250 = vunpack.c.l.s4 1966171168
      %v251 = vunpack.c.0.s8 %v250
      %v252 = vlaneseq
      %v253 = vshrl.u32 %v252, 7
      %v254 = vsub.s32 %v251, %v253
      %v255 = vrot.slane %v247, %v254
      %v257 = vunpack.c.l.s4 1966171168
      %v258 = vunpack.c.0.s8 %v257
      %v259 = vlaneseq
      %v260 = vshrl.u32 %v259, 7
      %v261 = vsub.s32 %v258, %v260
      %v262 = vrot.slane %v248, %v261
      %v263 = vcombine.high %v255, %v262
      %v265 = vunpack.c.l.s4 1966171168
      %v266 = vunpack.c.0.s8 %v265
      %v267 = vlaneseq
      %v268 = vshrl.u32 %v267, 7
      %v269 = vsub.s32 %v266, %v268
      %v270 = vrot.slane %v263, %v269
      %271 = vrot.lane.b32.xlu0 %v270, 16
      %v272 = vpop.permute.xlu0 %271
      %v278 = vcombine.low %v221, %v222
      %v279 = vcombine.low %v223, %v224
      %v281 = vunpack.c.l.s4 1966171168
      %v282 = vunpack.c.0.s8 %v281
      %v283 = vlaneseq
      %v284 = vshrl.u32 %v283, 7
      %v285 = vsub.s32 %v282, %v284
      %v286 = vrot.slane %v278, %v285
      %v288 = vunpack.c.l.s4 1966171168
      %v289 = vunpack.c.0.s8 %v288
      %v290 = vlaneseq
      %v291 = vshrl.u32 %v290, 7
      %v292 = vsub.s32 %v289, %v291
      %v293 = vrot.slane %v279, %v292
      %v294 = vcombine.low %v286, %v293
      %v295 = vcombine.high %v286, %v293
      %v297 = vunpack.c.l.s4 1966171168
      %v298 = vunpack.c.0.s8 %v297
      %v299 = vlaneseq
      %v300 = vshrl.u32 %v299, 7
      %v301 = vsub.s32 %v298, %v300
      %v302 = vrot.slane %v294, %v301
      %v304 = vunpack.c.l.s4 1966171168
      %v305 = vunpack.c.0.s8 %v304
      %v306 = vlaneseq
      %v307 = vshrl.u32 %v306, 7
      %v308 = vsub.s32 %v305, %v307
      %v309 = vrot.slane %v295, %v308
      %310 = vrot.lane.b32.xlu0 %v302, 16
      %v311 = vpop.permute.xlu0 %310
      %312 = vrot.lane.b32.xlu0 %v309, 16
      %v313 = vpop.permute.xlu0 %312
      %vm314 = vcmask 130048
      %v315 = vsel %vm314, %v311, %v313
      %v318 = vsel %vm314, %v272, %v311
      %319 = vrot.lane.b32.xlu0 %v302, 112
      %v320 = vpop.permute.xlu0 %319
      %321 = vrot.lane.b32.xlu0 %v309, 112
      %v322 = vpop.permute.xlu0 %321
      %vm323 = vcmask 916480
      %v324 = vsel %vm323, %v320, %v322
      %v331 = vcombine.low %v239, %v240
      %v332 = vcombine.low %v241, %v242
      %v334 = vunpack.c.l.s4 1966171168
      %v335 = vunpack.c.0.s8 %v334
      %v336 = vlaneseq
      %v337 = vshrl.u32 %v336, 7
      %v338 = vsub.s32 %v335, %v337
      %v339 = vrot.slane %v331, %v338
      %v341 = vunpack.c.l.s4 1966171168
      %v342 = vunpack.c.0.s8 %v341
      %v343 = vlaneseq
      %v344 = vshrl.u32 %v343, 7
      %v345 = vsub.s32 %v342, %v344
      %v346 = vrot.slane %v332, %v345
      %v347 = vcombine.low %v339, %v346
      %v349 = vunpack.c.l.s4 1966171168
      %v350 = vunpack.c.0.s8 %v349
      %v351 = vlaneseq
      %v352 = vshrl.u32 %v351, 7
      %v353 = vsub.s32 %v350, %v352
      %v354 = vrot.slane %v347, %v353
      %355 = vrot.lane.b32.xlu0 %v354, 112
      %v356 = vpop.permute.xlu0 %355
      %v358 = vsel %vm323, %v322, %v356
      %v359 = vlaneseq
      %v360 = vand.u32 %v359, 127
      %v361 = vadd.s32 %v360, 128
      %s362 = smul.u32 %s21, 256
      %v363 = vstv %s362
      %v364 = vadd.s32 %v360, %v363
      %v365 = vadd.s32 %v361, %v363
      %v366 = vand.u32 %v364, 15
      %v367 = vand.u32 %v365, 15
      %vm368 = vcmp.ge.s32.totalorder %v364, 16
      %vm369 = vcmp.ge.s32.totalorder %v365, 16
      %v370 = vsel %vm368, 1, 0
      %v371 = vsel %vm369, 1, 0
      %vm372 = vcmp.eq.s32.totalorder %v370, 1
      %vm373 = vcmp.eq.s32.totalorder %v371, 1
      %v374 = vsel %vm372, %v318, 0.0
      %v375 = vsel %vm373, %v315, 0.0
      %vm376 = vcmp.lt.s32.totalorder %v364, 240
      %vm377 = vcmp.lt.s32.totalorder %v365, 240
      %v378 = vsel %vm376, 1, 0
      %v379 = vsel %vm377, 1, 0
      %vm380 = vcmp.eq.s32.totalorder %v378, 1
      %vm381 = vcmp.eq.s32.totalorder %v379, 1
      %v382 = vsel %vm380, %v324, 0.0
      %v383 = vsel %vm381, %v358, 0.0
      %vm384 = vcmp.gt.s32.totalorder %v366, 0
      %vm385 = vcmp.gt.s32.totalorder %v367, 0
      %vm386 = vcmp.lt.s32.totalorder %v366, 15
      %vm387 = vcmp.lt.s32.totalorder %v367, 15
      %389 = vrot.lane.b32.xlu0 %v375, 1
      %v390 = vpop.permute.xlu0 %389
      %393 = vrot.lane.b32.xlu0 %v374, 1
      %v394 = vpop.permute.xlu0 %393
      %vm395 = vcmask 7168
      %v396 = vsel %vm395, %v394, %v390
      %v399 = vsel %vm395, %v390, %v394
      %v400 = vsel %vm384, 1, 0
      %v401 = vsel %vm385, 1, 0
      %vm402 = vcmp.eq.s32.totalorder %v400, 1
      %vm403 = vcmp.eq.s32.totalorder %v401, 1
      %v404 = vsel %vm402, %v399, 0.0
      %v405 = vsel %vm403, %v396, 0.0
      %406 = vrot.lane.b32.xlu0 %v374, 127
      %v407 = vpop.permute.xlu0 %406
      %408 = vrot.lane.b32.xlu0 %v375, 127
      %v409 = vpop.permute.xlu0 %408
      %vm410 = vcmask 1039360
      %v411 = vsel %vm410, %v407, %v409
      %v415 = vsel %vm410, %v409, %v407
      %v416 = vsel %vm386, 1, 0
      %v417 = vsel %vm387, 1, 0
      %vm418 = vcmp.eq.s32.totalorder %v416, 1
      %vm419 = vcmp.eq.s32.totalorder %v417, 1
      %v420 = vsel %vm418, %v411, 0.0
      %v421 = vsel %vm419, %v415, 0.0
      %422 = vrot.lane.b32.xlu0 %v309, 1
      %v423 = vpop.permute.xlu0 %422
      %425 = vrot.lane.b32.xlu0 %v302, 1
      %v426 = vpop.permute.xlu0 %425
      %v427 = vsel %vm395, %v426, %v423
      %v430 = vsel %vm395, %v423, %v426
      %v431 = vsel %vm402, %v430, 0.0
      %v432 = vsel %vm403, %v427, 0.0
      %433 = vrot.lane.b32.xlu0 %v302, 127
      %v434 = vpop.permute.xlu0 %433
      %435 = vrot.lane.b32.xlu0 %v309, 127
      %v436 = vpop.permute.xlu0 %435
      %v437 = vsel %vm410, %v434, %v436
      %v441 = vsel %vm410, %v436, %v434
      %v442 = vsel %vm418, %v437, 0.0
      %v443 = vsel %vm419, %v441, 0.0
      %445 = vrot.lane.b32.xlu0 %v383, 1
      %v446 = vpop.permute.xlu0 %445
      %449 = vrot.lane.b32.xlu0 %v382, 1
      %v450 = vpop.permute.xlu0 %449
      %v451 = vsel %vm395, %v450, %v446
      %v454 = vsel %vm395, %v446, %v450
      %v455 = vsel %vm402, %v454, 0.0
      %v456 = vsel %vm403, %v451, 0.0
      %457 = vrot.lane.b32.xlu0 %v382, 127
      %v458 = vpop.permute.xlu0 %457
      %459 = vrot.lane.b32.xlu0 %v383, 127
      %v460 = vpop.permute.xlu0 %459
      %v461 = vsel %vm410, %v458, %v460
      %v465 = vsel %vm410, %v460, %v458
      %v466 = vsel %vm418, %v461, 0.0
      %v467 = vsel %vm419, %v465, 0.0
      %v468 = vrot.slane %v374, 4
      %v469 = vrot.slane %v375, 4
      %v474 = vrot.slane %v431, 4
      %v475 = vrot.slane %v432, 4
      %v482 = vrot.slane %v442, 4
      %v483 = vrot.slane %v443, 4
      %v486 = vrot.slane %v382, 4
      %v487 = vrot.slane %v383, 4
      %vm490 = vcmask 1043456
      %v491 = vsel %vm490, %v404, %v468
      %v492 = vsel %vm490, %v405, %v469
      %v493 = vsel %vm490, %v420, %v474
      %v494 = vsel %vm490, %v421, %v475
      %v495 = vsel %vm490, %v302, %v482
      %v496 = vsel %vm490, %v309, %v483
      %v497 = vsel %vm490, %v455, %v486
      %v498 = vsel %vm490, %v456, %v487
      %v499 = vld [vmem:[%s1] sm:$0xff]
      %v500 = vld [vmem:[%s2] sm:$0xff]
      %502 = vset.pattern.permute.xlu0 0
      %503 = vperm.xlu0 %502, %v500
      %v504 = vpop.permute.xlu0 %503
      %vm506 = vcmask 293888
      %v508 = vsel %vm506, %v499, 0
      %v511 = vsel %vm490, %v466, 0
      %v514 = vsel %vm490, %v467, 0
      %516 = vmatprep.subr.mxu0 %v492
      %517 = vmatpush1.msra.mxu0 %v491
      %518 = vmatprep.subr.mxu0 %v494
      %519 = vmatpush1.msra.mxu0 %v493
      %520 = vmatprep.subr.mxu0 %v496
      %521 = vmatpush1.msra.mxu0 %v495
      %522 = vmatprep.subr.mxu0 %v498
      %523 = vmatpush1.msra.mxu0 %v497
      %524 = vmatprep.subr.mxu0 %v514
      %525 = vmatpush1.msra.mxu0 %v511
      %526 = vmatprep.subr.mxu0 0.0
      %527 = vmatpush1.msra.mxu0 0.0
      %528 = vmatprep.subr.mxu0 0.0
      %529 = vmatpush1.msra.mxu0 0.0
      %530 = vmatprep.subr.mxu0 0.0
      %531 = vmatpush1.msra.mxu0 0.0
      %532 = vmatprep.subr.mxu0 0.0
      %533 = vmatpush1.msra.mxu0 0.0
      %534 = vmatprep.subr.mxu0 0.0
      %535 = vmatpush1.msra.mxu0 0.0
      %536 = vmatprep.subr.mxu0 0.0
      %537 = vmatpush1.msra.mxu0 0.0
      %538 = vmatprep.subr.mxu0 0.0
      %539 = vmatpush1.msra.mxu0 0.0
      %540 = vmatprep.subr.mxu0 0.0
      %541 = vmatpush1.msra.mxu0 0.0
      %542 = vmatprep.subr.mxu0 0.0
      %543 = vmatpush1.msra.mxu0 0.0
      %544 = vmatprep.subr.mxu0 0.0
      %545 = vmatpush1.msra.mxu0 0.0
      %546 = vmatprep.subr.mxu0 0.0
      %547 = vmatpush1.msra.mxu0 0.0
      %548 = vmatprep.subr.mxu0 0.0
      %549 = vmatpush1.msra.mxu0 0.0
      %550 = vmatprep.subr.mxu0 0.0
      %551 = vmatpush1.msra.mxu0 0.0
      %552 = vmatprep.subr.mxu0 0.0
      %553 = vmatpush1.msra.mxu0 0.0
      %554 = vmatprep.subr.mxu0 0.0
      %555 = vmatpush1.msra.mxu0 0.0
      %556 = vmatprep.subr.mxu0 0.0
      %557 = vmatpush1.msra.mxu0 0.0
      %558 = vmatprep.subr.mxu0 0.0
      %559 = vmatpush1.msra.mxu0 0.0
      %560 = vmatprep.subr.mxu0 0.0
      %561 = vmatpush1.msra.mxu0 0.0
      %562 = vmatprep.subr.mxu0 0.0
      %563 = vmatpush1.msra.mxu0 0.0
      %564 = vmatprep.subr.mxu0 0.0
      %565 = vmatpush1.msra.mxu0 0.0
      %566 = vmatprep.subr.mxu0 0.0
      %567 = vmatpush1.msra.mxu0 0.0
      %568 = vmatprep.subr.mxu0 0.0
      %569 = vmatpush1.msra.mxu0 0.0
      %570 = vmatprep.subr.mxu0 0.0
      %571 = vmatpush1.msra.mxu0 0.0
      %572 = vmatprep.subr.mxu0 0.0
      %573 = vmatpush1.msra.mxu0 0.0
      %574 = vmatprep.subr.mxu0 0.0
      %575 = vmatpush1.msra.mxu0 0.0
      %576 = vmatprep.subr.mxu0 0.0
      %577 = vmatpush1.msra.mxu0 0.0
      %578 = vmatprep.subr.mxu0 0.0
      %579 = vmatpush1.msra.mxu0 0.0
      %580 = vmatprep.mubr.f32.mxu0 0.0
      %581 = vmatmul.mubr.f32.gmra.mrb[0].mxu0 %v508
      %v582 = vpop.f32.mrb[0].mxu0
      %v583 = vadd.f32 %v504, %v582
      %v584 = vpop.f32.mrb[0].mxu0
      %v585 = vadd.f32 %v504, %v584
      %586 = vdwg.mxu0
      %s587 = sld [smem:[#allocation2]]
      %vm588 = vcmp.ge.f32.partialorder %v583, 0.0
      %vm589 = vcmp.ge.f32.partialorder %v585, 0.0
      %v590 = vstv %s587
      %v591 = vmul.f32 %v590, %v583
      %v592 = vmul.f32 %v590, %v585
      %v593 = vsel %vm588, %v583, %v591
      %v594 = vsel %vm589, %v585, %v592
      %595 = vst [vmem:[%s217] sm:$0xff] %v593
      %596 = vst [vmem:[%s217 + $0x8] sm:$0xff] %v594
      %s597 = smul.u32 2, %s21
      %p598 = scmp.lt.s32.totalorder %s20, 1
      %s599 = scalar_select %p598, %s20, 1
      %p600 = scmp.lt.s32.totalorder %s597, 1
      %s601 = scalar_select %p600, %s597, 1
      %s602 = smul.addr %s599, 2
      %s603 = sadd.s32 %s601, %s602
      %s604 = smul.addr %s603, 8
      %s605 = scalar_lea.vmem %s4, %s604
      // Predicated region
      $region37: #{conv_block_forward.1} parent=35 // pred_check
        %p606 = pneg %p137
      $region38: #{conv_block_forward.1} parent=35 // pred_check_branch
        %608 = sbr.rel (%p606) target = $region40
      $region39: #{conv_block_forward.1} parent=35 // pred_region
        %s609 = smul.u32 2, %s21
      $region40: #{conv_block_forward.1} parent=35 // pred_fallthru
        _
    $region36: #{conv_block_forward.1} parent=5 // pred_fallthru
      _
    %p610 = scmp.le.s32.totalorder 2, %s11
    // Predicated region
    $region41: #{conv_block_forward.1} parent=5 // pred_check
      %p611 = pneg %p610
    $region42: #{conv_block_forward.1} parent=5 // pred_check_branch
      %613 = sbr.rel (%p611) target = $region44
    $region43: #{conv_block_forward.1} parent=5 // pred_region
      %s614 = ssub.s32 %s11, 2
      // Predicated region
      $region45: #{conv_block_forward.1} parent=43 // pred_check
        %p615 = pneg %p143
      $region46: #{conv_block_forward.1} parent=43 // pred_check_branch
        %617 = sbr.rel (%p615) target = $region48
      $region47: #{conv_block_forward.1} parent=43 // pred_region
        %s618 = smul.u32 2, %s23
        %p619 = scmp.lt.s32.totalorder %s22, 1
        %s620 = scalar_select %p619, %s22, 1
        %p621 = scmp.lt.s32.totalorder %s618, 1
        %s622 = scalar_select %p621, %s618, 1
        %s623 = smul.addr %s620, 2
        %s624 = sadd.s32 %s622, %s623
        %s625 = smul.addr %s624, 8
        %s626 = scalar_lea.vmem %s4, %s625
      $region48: #{conv_block_forward.1} parent=43 // pred_fallthru
        _
    $region44: #{conv_block_forward.1} parent=5 // pred_fallthru
      _
  $region6: #{conv_block_forward.1} parent=0 // loop_footer
    %s15 = sadd.s32 1, %s11
  $region7: #{conv_block_forward.1} parent=0 // loop_footer_branch
    %10 = sbr.rel target = $region3
  $region8: #{conv_block_forward.1} parent=0 // loop_exit
    _

</llo_original>
